<compile_context>
chip_gen: v7x
topology: tpu7x:2x2x1
jax: 0.10.0
libtpu: 0.0.40
codegen_flags: <defaults>
</compile_context>

<pallas_src>
import numpy as np
import jax
import jax.numpy as jnp
from jax.experimental import pallas as pl
from jax.experimental.pallas import tpu as pltpu


# --------------------------------------------------------------------------
# Kernel 1: per-edge messages, relation-grouped MXU matmul.
#   msg[tile] = src_h[tile] @ weight[group_id[tile]]   (f32 accumulate)
# --------------------------------------------------------------------------
def _msg_kernel(gid_ref, srch_ref, w_ref, msg_ref):
    del gid_ref  # only used by the index maps (scalar prefetch)
    msg_ref[...] = jnp.dot(
        srch_ref[...], w_ref[0], preferred_element_type=jnp.float32
    ).astype(msg_ref.dtype)


# --------------------------------------------------------------------------
# Kernel 2: scatter-mean of dst-sorted messages by dst (indicator matmul),
# plus the precomputed self-loop term.  Grid: (node tiles [parallel],
# per-node-tile edge tiles [arbitrary]).  The dst/msg BlockSpecs use a
# scalar-prefetched tile table so only relevant edge tiles are streamed.
# --------------------------------------------------------------------------
def _agg_kernel(ttab_ref, ntl_ref, dst_ref, msg_ref, invdeg_ref, self_ref,
                out_ref, acc_ref):
    del ttab_ref  # only used by the index maps
    i = pl.program_id(0)
    e = pl.program_id(1)
    TN = out_ref.shape[0]
    TE = msg_ref.shape[0]

    @pl.when(e == 0)
    def _():
        acc_ref[...] = jnp.zeros_like(acc_ref)

    # Only accumulate on the valid (non-clamped) edge tiles of node tile i;
    # clamped repeats of the last tile would double-count otherwise.
    @pl.when(e < ntl_ref[i])
    def _():
        node_ids = i * TN + jax.lax.broadcasted_iota(jnp.int32, (TN, TE), 0)
        ind = (node_ids == dst_ref[...]).astype(msg_ref.dtype)       # (TN, TE)
        acc_ref[...] += jnp.dot(ind, msg_ref[...],
                                preferred_element_type=jnp.float32)   # (TN, Dout)

    @pl.when(e == pl.num_programs(1) - 1)
    def _():
        out_ref[...] = self_ref[...] + acc_ref[...] * invdeg_ref[...]


# --------------------------------------------------------------------------
# Wrapper: host-side index glue (sorting, padding, degree, tile ranges), then
# one XLA matmul (self loop), two pallas_calls, and one XLA gather in between.
# --------------------------------------------------------------------------
def rgcn_layer(h, edges, weight, self_loop_weight, *,
               node_tile=128, edge_tile=256,
               compute_dtype=jnp.bfloat16):
    h = jnp.asarray(h, jnp.float32)
    weight = jnp.asarray(weight, jnp.float32)
    self_loop_weight = jnp.asarray(self_loop_weight, jnp.float32)

    N, Din = h.shape
    R, _, Dout = weight.shape
    edges_np = np.asarray(edges)
    E = edges_np.shape[0]
    assert E > 0, "rgcn_layer expects at least one edge"

    src = edges_np[:, 0].astype(np.int64)
    rel = edges_np[:, 1].astype(np.int64)
    dst = edges_np[:, 2].astype(np.int64)

    TN, TE = node_tile, edge_tile
    N_pad = ((N + TN - 1) // TN) * TN          # keep N_pad/TN >= 2 for v7x megacore
    num_node_tiles = N_pad // TN
    sentinel = N_pad                            # dst value that never matches a node id

    # torch: index_matrix[dst] = arange(E); last write wins for duplicate dst.
    # Equivalent to max-by-edge-index because arange(E) increases in write order.
    index_matrix = np.zeros((N,), np.int64)
    np.maximum.at(index_matrix, dst, np.arange(E, dtype=np.int64))
    gidx = index_matrix[dst]
    # Apply the `msg = msg[gidx]` gather to the inputs instead of the messages.
    src_g = src[gidx]
    rel_g = rel[gidx]

    # ---- Kernel-1 layout: relation-grouped, each group padded to edge_tile. ----
    row_of = np.zeros((E,), np.int64)           # original edge -> kernel-1 msg row
    src_blocks, gid_list = [], []
    offset = 0
    for r in range(R):
        idx = np.nonzero(rel_g == r)[0]
        cnt = int(idx.shape[0])
        if cnt == 0:
            continue
        pad = (-cnt) % TE
        row_of[idx] = offset + np.arange(cnt)
        src_blocks.append(np.concatenate([src_g[idx], np.zeros((pad,), np.int64)]))
        gid_list.extend([r] * ((cnt + pad) // TE))
        offset += cnt + pad
    E1_pad = offset
    src_p = np.concatenate(src_blocks).astype(np.int32)
    group_id = jnp.asarray(np.asarray(gid_list, np.int32))
    n_msg_tiles = E1_pad // TE

    # ---- Kernel-2 layout: dst-sorted edges, tail-padded with sentinel dsts. ----
    order2 = np.argsort(dst, kind="stable")
    dst_s = dst[order2]
    pad2 = (-E) % TE
    E2_pad = E + pad2
    n_agg_tiles = E2_pad // TE
    dst_p = np.concatenate(
        [dst_s, np.full((pad2,), sentinel, np.int64)]).astype(np.int32)
    gather_idx = np.concatenate(
        [row_of[order2], np.zeros((pad2,), np.int64)]).astype(np.int32)

    # Per-node-tile edge-tile ranges (dst sorted -> each range is contiguous).
    boundaries = np.searchsorted(dst_s, np.arange(num_node_tiles + 1) * TN,
                                 side="left")
    lo, hi = boundaries[:-1], boundaries[1:]
    t_start = lo // TE
    t_end = np.where(hi > lo, (hi - 1) // TE + 1, t_start)
    n_tiles = (t_end - t_start).astype(np.int32)
    max_tiles = int(max(1, int(n_tiles.max())))
    # Flat (node_tile, step) -> edge-tile-index table; clamp ragged tails to the
    # last valid tile (repeat => no re-DMA; accumulation is pl.when-guarded).
    tile_table = np.zeros((num_node_tiles, max_tiles), np.int64)
    for i in range(num_node_tiles):
        idxs = t_start[i] + np.minimum(np.arange(max_tiles),
                                       max(int(n_tiles[i]) - 1, 0))
        tile_table[i] = np.clip(idxs, 0, n_agg_tiles - 1)
    tile_table_flat = jnp.asarray(tile_table.reshape(-1).astype(np.int32))
    n_tiles_j = jnp.asarray(n_tiles)
    MT = max_tiles

    # Exact in-degree reciprocal, precomputed on the host (no in-kernel counts).
    deg = np.bincount(dst, minlength=N).astype(np.float64)
    inv_deg = np.where(deg > 0, 1.0 / np.maximum(deg, 1.0), 1.0).astype(np.float32)
    inv_deg = np.concatenate([inv_deg, np.ones((N_pad - N,), np.float32)])
    inv_deg = jnp.asarray(inv_deg).reshape(N_pad, 1)

    # Device-side glue (bf16 by default; f32 accumulation inside the kernels).
    cdt = compute_dtype
    h_c = h.astype(cdt)
    w_c = weight.astype(cdt)
    src_h = h_c[jnp.asarray(src_p)]                     # (E1_pad, Din)

    # Self-loop term hoisted out of the scatter kernel (plain XLA matmul, f32).
    selfout = jnp.pad(h @ self_loop_weight, ((0, N_pad - N), (0, 0)))

    # ---- kernel 1: per-edge messages (one pass over relation-grouped tiles) ---
    msg = pl.pallas_call(
        _msg_kernel,
        out_shape=jax.ShapeDtypeStruct((E1_pad, Dout), cdt),
        grid_spec=pltpu.PrefetchScalarGridSpec(
            num_scalar_prefetch=1,
            grid=(n_msg_tiles,),
            in_specs=[
                pl.BlockSpec((TE, Din), lambda i, gid: (i, 0)),
                pl.BlockSpec((1, Din, Dout), lambda i, gid: (gid[i], 0, 0)),
            ],
            out_specs=pl.BlockSpec((TE, Dout), lambda i, gid: (i, 0)),
        ),
        compiler_params=pltpu.CompilerParams(
            dimension_semantics=("parallel",)),      # v7x: shard over both TCs
    )(group_id, src_h, w_c)

    # Permute messages from rel-sorted to dst-sorted order (one cheap XLA gather).
    msg_dst = msg[jnp.asarray(gather_idx)]              # (E2_pad, Dout)
    dst2d = jnp.asarray(dst_p).reshape(1, E2_pad)

    # ---- kernel 2: scatter-mean by dst over per-node-tile edge-tile ranges ----
    out = pl.pallas_call(
        _agg_kernel,
        out_shape=jax.ShapeDtypeStruct((N_pad, Dout), jnp.float32),
        grid_spec=pltpu.PrefetchScalarGridSpec(
            num_scalar_prefetch=2,
            grid=(num_node_tiles, max_tiles),
            in_specs=[
                pl.BlockSpec((1, TE),
                             lambda i, e, tt, nt: (0, tt[i * MT + e])),   # dst ids
                pl.BlockSpec((TE, Dout),
                             lambda i, e, tt, nt: (tt[i * MT + e], 0)),   # messages
                pl.BlockSpec((TN, 1),
                             lambda i, e, tt, nt: (i, 0)),                # 1/deg
                pl.BlockSpec((TN, Dout),
                             lambda i, e, tt, nt: (i, 0)),                # self loop
            ],
            out_specs=pl.BlockSpec((TN, Dout), lambda i, e, tt, nt: (i, 0)),
            scratch_shapes=[
                pltpu.VMEM((TN, Dout), jnp.float32),   # message accumulator
            ],
        ),
        compiler_params=pltpu.CompilerParams(
            dimension_semantics=("parallel", "arbitrary")),
    )(tile_table_flat, n_tiles_j, dst2d, msg_dst, inv_deg, selfout)

    return out[:N]


# --------------------------------------------------------------------------
# Pure-JAX transcription of the torch forward for verification.
# --------------------------------------------------------------------------
def rgcn_reference(h, edges, weight, self_loop_weight):
    src, rel, dst = edges[:, 0], edges[:, 1], edges[:, 2]
    E, N = edges.shape[0], h.shape[0]
    src_h = h[src]
    w = weight[rel]
    index_matrix = jnp.zeros((N,), jnp.int32).at[dst].max(
        jnp.arange(E, dtype=jnp.int32))
    msg = jnp.einsum('ed,edo->eo', src_h, w)
    msg = msg[index_matrix[dst]]
    dst_u, dst_inv, cnt = jnp.unique(dst, return_inverse=True,
                                     return_counts=True)
    agg = jnp.zeros((dst_u.shape[0], msg.shape[1]), msg.dtype).at[dst_inv].add(msg)
    agg = agg / cnt[:, None].astype(msg.dtype)
    out = h @ self_loop_weight
    out = out.at[dst_u].add(agg)
    return out


if __name__ == "__main__":
    key = jax.random.PRNGKey(0)
    N, Din, Dout, R, E = 200, 64, 128, 4, 300
    k1, k2, k3, k4, k5, k6 = jax.random.split(key, 6)

    # deterministic xavier_uniform with gain=sqrt(2) (relu), as in __init__
    gain = 2.0 ** 0.5
    fan_in, fan_out = Din * Dout, R * Dout
    bound = gain * (6.0 / (fan_in + fan_out)) ** 0.5
    weight = jax.random.uniform(k1, (R, Din, Dout), jnp.float32, -bound, bound)
    bound2 = (6.0 / (Din + Dout)) ** 0.5
    self_loop_weight = jax.random.uniform(k2, (Din, Dout), jnp.float32,
                                          -bound2, bound2)

    h = jax.random.normal(k3, (N, Din), jnp.float32)
    src = jax.random.randint(k4, (E,), 0, N, dtype=jnp.int32)
    rel = jax.random.randint(k5, (E,), 0, R, dtype=jnp.int32)
    dst = jax.random.randint(k6, (E,), 0, N, dtype=jnp.int32)
    edges = jnp.stack([src, rel, dst], axis=1)   # rows = (src, rel, dst)

    ref = rgcn_reference(h, edges, weight, self_loop_weight)

    # f32 path (exact-ish): tight tolerance.
    out_f32 = rgcn_layer(h, edges, weight, self_loop_weight,
                         compute_dtype=jnp.float32)
    out_f32 = jax.block_until_ready(out_f32)
    assert out_f32.shape == (N, Dout)
    assert jnp.allclose(out_f32, ref, rtol=2e-3, atol=2e-3), "f32 mismatch"

    # bf16 messages/indicator with f32 accumulation: bf16-level tolerance.
    out_bf16 = rgcn_layer(h, edges, weight, self_loop_weight,
                          compute_dtype=jnp.bfloat16)
    out_bf16 = jax.block_until_ready(out_bf16)
    assert out_bf16.shape == (N, Dout)
    assert jnp.allclose(out_bf16, ref, rtol=2e-2, atol=2e-2), "bf16 mismatch"

    print("KERNEL_OK")
</pallas_src>

<mosaic_0001>
module attributes {stable_mosaic.version = 11 : i64} {
  func.func @_msg_kernel(%arg0: i32, %arg1: memref<4xi32, #tpu.memory_space<smem>>, %arg2: memref<256x64xf32, #tpu.memory_space<vmem>>, %arg3: memref<1x64x128xf32, #tpu.memory_space<vmem>>, %arg4: memref<256x128xf32, #tpu.memory_space<vmem>>) attributes {dimension_semantics = [#tpu.dimension_semantics<parallel>], iteration_bounds = array<i64: 4>, scalar_prefetch = 1 : i64, scratch_operands = 0 : i64, tpu.core_type = #tpu.core_type<tc>, window_params = [{transform_indices = @transform_0, window_bounds = array<i64: 256, 64>}, {transform_indices = @transform_1, window_bounds = array<i64: 1, 64, 128>}, {transform_indices = @transform_2, window_bounds = array<i64: 256, 128>}]} {
    %c0 = arith.constant 0 : index
    %c0_0 = arith.constant 0 : index
    %0 = vector.load %arg2[%c0, %c0_0] : memref<256x64xf32, #tpu.memory_space<vmem>>, vector<256x64xf32>
    %c0_1 = arith.constant 0 : index
    %c0_2 = arith.constant 0 : index
    %c0_3 = arith.constant 0 : index
    %1 = vector.load %arg3[%c0_1, %c0_2, %c0_3] : memref<1x64x128xf32, #tpu.memory_space<vmem>>, vector<1x64x128xf32>
    %2 = vector.shape_cast %1 : vector<1x64x128xf32> to vector<64x128xf32>
    %cst = arith.constant dense<0.000000e+00> : vector<256x128xf32>
    %3 = tpu.matmul %0, %2, %cst {dimension_numbers = #tpu.dot_dimension_numbers<[1], [0], [0], [1], [0, 0, 1, 1], [], []>} : vector<256x64xf32>, vector<64x128xf32>, vector<256x128xf32> -> vector<256x128xf32>
    %c0_4 = arith.constant 0 : index
    %c0_5 = arith.constant 0 : index
    %4 = vector.load %arg4[%c0_4, %c0_5] : memref<256x128xf32, #tpu.memory_space<vmem>>, vector<256x128xf32>
    tpu.vector_store %arg4[%c0_4, %c0_5], %3 {strides = array<i32>} : memref<256x128xf32, #tpu.memory_space<vmem>>, vector<256x128xf32>,
    return
  }
  func.func @transform_0(%arg0: i32, %arg1: memref<4xi32, #tpu.memory_space<smem>>) -> (i32, i32) {
    %c0_i32 = arith.constant 0 : i32
    %c0_i32_0 = arith.constant 0 : i32
    return %arg0, %c0_i32 : i32, i32
  }
  func.func @transform_1(%arg0: i32, %arg1: memref<4xi32, #tpu.memory_space<smem>>) -> (i32, i32, i32) {
    %0 = arith.index_cast %arg0 : i32 to index
    %1 = memref.load %arg1[%0] : memref<4xi32, #tpu.memory_space<smem>>
    %c0_i32 = arith.constant 0 : i32
    %c0_i32_0 = arith.constant 0 : i32
    %c0_i32_1 = arith.constant 0 : i32
    return %1, %c0_i32, %c0_i32_0 : i32, i32, i32
  }
  func.func @transform_2(%arg0: i32, %arg1: memref<4xi32, #tpu.memory_space<smem>>) -> (i32, i32) {
    %c0_i32 = arith.constant 0 : i32
    %c0_i32_0 = arith.constant 0 : i32
    return %arg0, %c0_i32 : i32, i32
  }
}

</mosaic_0001>

<llo_original>
// kernel: tpu_custom_call.1
$region0: #{tpu_custom_call.1}
  #allocation0 [shape = 'u32[]', space=smem, size = 0x4, offset = 0x4, fixed_abs, tag = 'smem constant byte address 0x4 - core index']
  #allocation1 [shape = 'u32[144,128]{1,0:T(1,128)}', space=vmem, size = 0x12000, scoped, tag = 'internal scratch']
  #allocation2 [shape = 's32[1]{0}', space=sflag, size = 0x4, scoped, tag = 'scoped memory for tpu_custom_call.1']
  #allocation3 [shape = 'u8[512]{0}', space=smem, size = 0x200, scoped, tag = 'prefetched SMEM operand 0']
  %s0 = inlined_call_operand.vmem [shape: s32[4], index: 0, kind: input, shape index: {}]
  %s1 = inlined_call_operand.vmem [shape: f32[1024,64], index: 1, kind: input, shape index: {}]
  %s2 = inlined_call_operand.vmem [shape: f32[4,64,128], index: 2, kind: input, shape index: {}]
  %s3 = inlined_call_operand.hbm [shape: f32[1024,128], index: 3, kind: output, shape index: {}]
  %s4 = sld [smem:[#allocation0]]
  $region41: #{tpu_custom_call.1} parent=0
    _
  %s6 = ssub.s32 1, %s4
  %s7 = scalar_select 0, %s6, %s4
  %s8 = sshll.u32 %s0, 4
  %s9 = int_to_ptr.vmem [resolvable:$true] %s8
  %11 = dma.vmem_to_smem %s9, 16, [#allocation3], [#allocation2]
  %12 = dma.done [#allocation2], 16
  %13 = sfence
  $region1: #{tpu_custom_call.1} parent=0
    #allocation4 [shape = 'u8[262144]{0}', space=vmem, size = 0x40000, scoped, tag = 'output window, operand 0']
    #allocation5 [shape = 's32[2]{0}', space=sflag, size = 0x8, scoped, tag = 'scoped memory for tpu_custom_call.1']
    %14 = vsyncpa [#allocation5], 0
    %s15 = scalar_lea.sflag [#allocation5], 1
    %16 = vsyncpa %s15, 0
    loop: start=0, step=1, limit=6
    $region2: #{tpu_custom_call.1} parent=1 // loop_pre_header
      _
    $region3: #{tpu_custom_call.1} parent=1 // loop_header
      %s18 = sphi 0, %s22
      %p19 = scmp.ge.s32.totalorder %s18, 6
      %s28 = sphi 0, %s30
      %s31 = sphi 0, %s28
      %s32 = sphi 0, %s31
      %s48 = sphi 0, %s32
      %s56 = sphi 0, %s58
      %s59 = sphi 0, %s56
      %s60 = sphi 0, %s59
      %s76 = sphi 0, %s60
      %s82 = sphi 0, %s84
      %s85 = sphi 0, %s82
      %s86 = sphi 0, %s85
      %s102 = sphi 0, %s86
    $region4: #{tpu_custom_call.1} parent=1 // loop_header_branch
      %21 = sbr.rel (%p19) target = $region8
    $region5: #{tpu_custom_call.1} parent=1 // loop_body
      %s23 = ssub.s32 %s18, 1
      %s24 = ssub.s32 %s18, 2
      %s25 = sadd.s32 %s18, 1
      %s26 = ssub.s32 %s18, %s25
      %p27 = scmp.eq.s32.totalorder %s26, 0
      %s29 = sadd.s32 %s28, 1
      %s30 = scalar_select %p27, %s28, %s29
      %p33 = pneg %p27
      %p34 = scmp.eq.s32.totalorder %s18, 3
      %p35 = por %p33, %p34
      %p36 = scmp.ne.s32.totalorder %s28, %s31
      %p37 = scmp.eq.s32.totalorder %s18, 0
      %p38 = por %p36, %p37
      %p39 = scmp.ne.s32.totalorder %s28, %s31
      %p40 = scmp.eq.s32.totalorder %s23, 3
      %p41 = por %p39, %p40
      %p42 = scmp.ne.s32.totalorder %s31, %s32
      %p43 = scmp.eq.s32.totalorder %s23, 0
      %p44 = por %p42, %p43
      %p45 = scmp.ne.s32.totalorder %s31, %s32
      %p46 = scmp.eq.s32.totalorder %s24, 3
      %p47 = por %p45, %p46
      %p49 = scmp.ne.s32.totalorder %s32, %s48
      %p50 = scmp.eq.s32.totalorder %s24, 0
      %p51 = por %p49, %p50
      %s52 = sld [smem:[#allocation3 + %s18]]
      %s53 = sld [smem:[#allocation3 + %s25]]
      %s54 = ssub.s32 %s52, %s53
      %p55 = scmp.eq.s32.totalorder %s54, 0
      %s57 = sadd.s32 %s56, 1
      %s58 = scalar_select %p55, %s56, %s57
      %p61 = pneg %p55
      %p62 = scmp.eq.s32.totalorder %s18, 3
      %p63 = por %p61, %p62
      %p64 = scmp.ne.s32.totalorder %s56, %s59
      %p65 = scmp.eq.s32.totalorder %s18, 0
      %p66 = por %p64, %p65
      %p67 = scmp.ne.s32.totalorder %s56, %s59
      %p68 = scmp.eq.s32.totalorder %s23, 3
      %p69 = por %p67, %p68
      %p70 = scmp.ne.s32.totalorder %s59, %s60
      %p71 = scmp.eq.s32.totalorder %s23, 0
      %p72 = por %p70, %p71
      %p73 = scmp.ne.s32.totalorder %s59, %s60
      %p74 = scmp.eq.s32.totalorder %s24, 3
      %p75 = por %p73, %p74
      %p77 = scmp.ne.s32.totalorder %s60, %s76
      %p78 = scmp.eq.s32.totalorder %s24, 0
      %p79 = por %p77, %p78
      %s80 = ssub.s32 %s18, %s25
      %p81 = scmp.eq.s32.totalorder %s80, 0
      %s83 = sadd.s32 %s82, 1
      %s84 = scalar_select %p81, %s82, %s83
      %p87 = pneg %p81
      %p88 = scmp.eq.s32.totalorder %s18, 3
      %p89 = por %p87, %p88
      %p90 = scmp.ne.s32.totalorder %s82, %s85
      %p91 = scmp.eq.s32.totalorder %s18, 0
      %p92 = por %p90, %p91
      %p93 = scmp.ne.s32.totalorder %s82, %s85
      %p94 = scmp.eq.s32.totalorder %s23, 3
      %p95 = por %p93, %p94
      %p96 = scmp.ne.s32.totalorder %s85, %s86
      %p97 = scmp.eq.s32.totalorder %s23, 0
      %p98 = por %p96, %p97
      %p99 = scmp.ne.s32.totalorder %s85, %s86
      %p100 = scmp.eq.s32.totalorder %s24, 3
      %p101 = por %p99, %p100
      %p103 = scmp.ne.s32.totalorder %s86, %s102
      %p104 = scmp.eq.s32.totalorder %s24, 0
      %p105 = por %p103, %p104
      %p106 = scmp.le.s32.totalorder 1, %s18
      %p107 = scmp.lt.s32.totalorder %s18, 5
      %p108 = pnand %p106, %p107
      %p109 = pneg %p108
      // Predicated region
      $region9: #{tpu_custom_call.1} parent=5 // pred_check
        _
      $region10: #{tpu_custom_call.1} parent=5 // pred_check_branch
        %111 = sbr.rel (%p108) target = $region12
      $region11: #{tpu_custom_call.1} parent=5 // pred_region
        %s112 = ssub.s32 %s18, 1
      $region12: #{tpu_custom_call.1} parent=5 // pred_fallthru
        _
      %p113 = scmp.lt.s32.totalorder %s18, 4
      // Predicated region
      $region13: #{tpu_custom_call.1} parent=5 // pred_check
        %p114 = pneg %p113
      $region14: #{tpu_custom_call.1} parent=5 // pred_check_branch
        %116 = sbr.rel (%p114) target = $region16
      $region15: #{tpu_custom_call.1} parent=5 // pred_region
        // Predicated region
        $region17: #{tpu_custom_call.1} parent=15 // pred_check
          %p117 = pneg %p38
        $region18: #{tpu_custom_call.1} parent=15 // pred_check_branch
          %119 = sbr.rel (%p117) target = $region20
        $region19: #{tpu_custom_call.1} parent=15 // pred_region
          %s120 = smul.u32 32, %s18
          %p121 = scmp.lt.s32.totalorder %s120, 127
          %s122 = scalar_select %p121, %s120, 127
          %s123 = smul.addr %s122, 8
          %s124 = scalar_lea.vmem %s1, %s123
          %s125 = smul.u32 32, %s18
        $region20: #{tpu_custom_call.1} parent=15 // pred_fallthru
          _
        // Predicated region
        $region21: #{tpu_custom_call.1} parent=15 // pred_check
          %p126 = pneg %p66
        $region22: #{tpu_custom_call.1} parent=15 // pred_check_branch
          %128 = sbr.rel (%p126) target = $region24
        $region23: #{tpu_custom_call.1} parent=15 // pred_region
          %s129 = sld [smem:[#allocation3 + %s18]]
          %p130 = scmp.lt.s32.totalorder %s129, 3
          %s131 = scalar_select %p130, %s129, 3
          %s132 = smul.addr %s131, 8
          %s133 = smul.addr %s132, 8
          %s134 = scalar_lea.vmem %s2, %s133
          %s135 = sld [smem:[#allocation3 + %s18]]
        $region24: #{tpu_custom_call.1} parent=15 // pred_fallthru
          _
      $region16: #{tpu_custom_call.1} parent=5 // pred_fallthru
        _
      %p136 = scmp.le.s32.totalorder 1, %s18
      %p137 = scmp.lt.s32.totalorder %s18, 5
      %p138 = pnand %p136, %p137
      %p139 = pneg %p138
      // Predicated region
      $region25: #{tpu_custom_call.1} parent=5 // pred_check
        _
      $region26: #{tpu_custom_call.1} parent=5 // pred_check_branch
        %141 = sbr.rel (%p138) target = $region28
      $region27: #{tpu_custom_call.1} parent=5 // pred_region
        %s142 = ssub.s32 %s18, 1
        %s143 = smul.u32 32, %s23
        %p144 = scmp.lt.s32.totalorder %s143, 127
        %s145 = scalar_select %p144, %s143, 127
        %s146 = smul.addr %s145, 8
        %s147 = scalar_lea.vmem %s1, %s146
        %p148 = pneg %p44
        %p149 = pneg %p41
        %s150 = sld [smem:[#allocation3 + %s23]]
        %p151 = scmp.lt.s32.totalorder %s150, 3
        %s152 = scalar_select %p151, %s150, 3
        %s153 = smul.addr %s152, 8
        %s154 = smul.addr %s153, 8
        %s155 = scalar_lea.vmem %s2, %s154
        %p156 = pneg %p72
        %p157 = pneg %p69
        %p158 = pneg %p98
        %p159 = pneg %p95
        %s160 = sand.u32 %s85, 1
        %s161 = scalar_lea.sflag [#allocation5], %s160
        %s162 = sand.u32 %s85, 1
        %s163 = smul.addr %s162, 256
        %s164 = scalar_lea.vmem [#allocation4], %s163
        %s165 = smul.u32 32, %s23
        %p166 = scmp.lt.s32.totalorder %s165, 127
        %s167 = scalar_select %p166, %s165, 127
        %s168 = smul.addr %s167, 8
        %s169 = scalar_lea.vmem %s1, %s168
        %s170 = smul.u32 32, %s23
        %s171 = sld [smem:[#allocation3 + %s23]]
        %p172 = scmp.lt.s32.totalorder %s171, 3
        %s173 = scalar_select %p172, %s171, 3
        %s174 = smul.addr %s173, 8
        %s175 = smul.addr %s174, 8
        %s176 = scalar_lea.vmem %s2, %s175
        %s177 = sld [smem:[#allocation3 + %s23]]
        %s178 = smul.u32 32, %s23
        %v179 = vld [vmem:[%s169] sm:$0xff]
        %v180 = vld [vmem:[%s169 + $0x8] sm:$0xff]
        %v181 = vld [vmem:[%s169 + $0x10] sm:$0xff]
        %v182 = vld [vmem:[%s169 + $0x18] sm:$0xff]
        %v183 = vld [vmem:[%s169 + $0x20] sm:$0xff]
        %v184 = vld [vmem:[%s169 + $0x28] sm:$0xff]
        %v185 = vld [vmem:[%s169 + $0x30] sm:$0xff]
        %v186 = vld [vmem:[%s169 + $0x38] sm:$0xff]
        %v187 = vld [vmem:[%s169 + $0x40] sm:$0xff]
        %v188 = vld [vmem:[%s169 + $0x48] sm:$0xff]
        %v189 = vld [vmem:[%s169 + $0x50] sm:$0xff]
        %v190 = vld [vmem:[%s169 + $0x58] sm:$0xff]
        %v191 = vld [vmem:[%s169 + $0x60] sm:$0xff]
        %v192 = vld [vmem:[%s169 + $0x68] sm:$0xff]
        %v193 = vld [vmem:[%s169 + $0x70] sm:$0xff]
        %v194 = vld [vmem:[%s169 + $0x78] sm:$0xff]
        %v195 = vld [vmem:[%s169 + $0x80] sm:$0xff]
        %v196 = vld [vmem:[%s169 + $0x88] sm:$0xff]
        %v197 = vld [vmem:[%s169 + $0x90] sm:$0xff]
        %v198 = vld [vmem:[%s169 + $0x98] sm:$0xff]
        %v199 = vld [vmem:[%s169 + $0xa0] sm:$0xff]
        %v200 = vld [vmem:[%s169 + $0xa8] sm:$0xff]
        %v201 = vld [vmem:[%s169 + $0xb0] sm:$0xff]
        %v202 = vld [vmem:[%s169 + $0xb8] sm:$0xff]
        %v203 = vld [vmem:[%s169 + $0xc0] sm:$0xff]
        %v204 = vld [vmem:[%s169 + $0xc8] sm:$0xff]
        %v205 = vld [vmem:[%s169 + $0xd0] sm:$0xff]
        %v206 = vld [vmem:[%s169 + $0xd8] sm:$0xff]
        %v207 = vld [vmem:[%s169 + $0xe0] sm:$0xff]
        %v208 = vld [vmem:[%s169 + $0xe8] sm:$0xff]
        %v209 = vld [vmem:[%s169 + $0xf0] sm:$0xff]
        %v210 = vld [vmem:[%s169 + $0xf8] sm:$0xff]
        %v211 = vld [vmem:[%s176] sm:$0xff]
        %v212 = vld [vmem:[%s176 + $0x8] sm:$0xff]
        %v213 = vld [vmem:[%s176 + $0x10] sm:$0xff]
        %v214 = vld [vmem:[%s176 + $0x18] sm:$0xff]
        %v215 = vld [vmem:[%s176 + $0x20] sm:$0xff]
        %v216 = vld [vmem:[%s176 + $0x28] sm:$0xff]
        %v217 = vld [vmem:[%s176 + $0x30] sm:$0xff]
        %v218 = vld [vmem:[%s176 + $0x38] sm:$0xff]
        %vm219 = vcmask 523264
        %v221 = vsel %vm219, %v179, 0
        %v224 = vsel %vm219, %v180, 0
        %v227 = vsel %vm219, %v181, 0
        %v230 = vsel %vm219, %v182, 0
        %v233 = vsel %vm219, %v183, 0
        %v236 = vsel %vm219, %v184, 0
        %v239 = vsel %vm219, %v185, 0
        %v242 = vsel %vm219, %v186, 0
        %v245 = vsel %vm219, %v187, 0
        %v248 = vsel %vm219, %v188, 0
        %v251 = vsel %vm219, %v189, 0
        %v254 = vsel %vm219, %v190, 0
        %v257 = vsel %vm219, %v191, 0
        %v260 = vsel %vm219, %v192, 0
        %v263 = vsel %vm219, %v193, 0
        %v266 = vsel %vm219, %v194, 0
        %v269 = vsel %vm219, %v195, 0
        %v272 = vsel %vm219, %v196, 0
        %v275 = vsel %vm219, %v197, 0
        %v278 = vsel %vm219, %v198, 0
        %v281 = vsel %vm219, %v199, 0
        %v284 = vsel %vm219, %v200, 0
        %v287 = vsel %vm219, %v201, 0
        %v290 = vsel %vm219, %v202, 0
        %v293 = vsel %vm219, %v203, 0
        %v296 = vsel %vm219, %v204, 0
        %v299 = vsel %vm219, %v205, 0
        %v302 = vsel %vm219, %v206, 0
        %v305 = vsel %vm219, %v207, 0
        %v308 = vsel %vm219, %v208, 0
        %v311 = vsel %vm219, %v209, 0
        %v314 = vsel %vm219, %v210, 0
        %316 = vmatprep.subr.mxu0 0.0
        %317 = vmatpush1.msra.mxu0 %v211
        %318 = vmatprep.subr.mxu0 0.0
        %319 = vmatpush1.msra.mxu0 %v212
        %320 = vmatprep.subr.mxu0 0.0
        %321 = vmatpush1.msra.mxu0 %v213
        %322 = vmatprep.subr.mxu0 0.0
        %323 = vmatpush1.msra.mxu0 %v214
        %324 = vmatprep.subr.mxu0 0.0
        %325 = vmatpush1.msra.mxu0 %v215
        %326 = vmatprep.subr.mxu0 0.0
        %327 = vmatpush1.msra.mxu0 %v216
        %328 = vmatprep.subr.mxu0 0.0
        %329 = vmatpush1.msra.mxu0 %v217
        %330 = vmatprep.subr.mxu0 0.0
        %331 = vmatpush1.msra.mxu0 %v218
        %332 = vmatprep.subr.mxu0 0.0
        %333 = vmatpush1.msra.mxu0 0.0
        %334 = vmatprep.subr.mxu0 0.0
        %335 = vmatpush1.msra.mxu0 0.0
        %336 = vmatprep.subr.mxu0 0.0
        %337 = vmatpush1.msra.mxu0 0.0
        %338 = vmatprep.subr.mxu0 0.0
        %339 = vmatpush1.msra.mxu0 0.0
        %340 = vmatprep.subr.mxu0 0.0
        %341 = vmatpush1.msra.mxu0 0.0
        %342 = vmatprep.subr.mxu0 0.0
        %343 = vmatpush1.msra.mxu0 0.0
        %344 = vmatprep.subr.mxu0 0.0
        %345 = vmatpush1.msra.mxu0 0.0
        %346 = vmatprep.subr.mxu0 0.0
        %347 = vmatpush1.msra.mxu0 0.0
        %348 = vmatprep.subr.mxu0 0.0
        %349 = vmatpush1.msra.mxu0 0.0
        %350 = vmatprep.subr.mxu0 0.0
        %351 = vmatpush1.msra.mxu0 0.0
        %352 = vmatprep.subr.mxu0 0.0
        %353 = vmatpush1.msra.mxu0 0.0
        %354 = vmatprep.subr.mxu0 0.0
        %355 = vmatpush1.msra.mxu0 0.0
        %356 = vmatprep.subr.mxu0 0.0
        %357 = vmatpush1.msra.mxu0 0.0
        %358 = vmatprep.subr.mxu0 0.0
        %359 = vmatpush1.msra.mxu0 0.0
        %360 = vmatprep.subr.mxu0 0.0
        %361 = vmatpush1.msra.mxu0 0.0
        %362 = vmatprep.subr.mxu0 0.0
        %363 = vmatpush1.msra.mxu0 0.0
        %364 = vmatprep.subr.mxu0 0.0
        %365 = vmatpush1.msra.mxu0 0.0
        %366 = vmatprep.subr.mxu0 0.0
        %367 = vmatpush1.msra.mxu0 0.0
        %368 = vmatprep.subr.mxu0 0.0
        %369 = vmatpush1.msra.mxu0 0.0
        %370 = vmatprep.subr.mxu0 0.0
        %371 = vmatpush1.msra.mxu0 0.0
        %372 = vmatprep.subr.mxu0 0.0
        %373 = vmatpush1.msra.mxu0 0.0
        %374 = vmatprep.subr.mxu0 0.0
        %375 = vmatpush1.msra.mxu0 0.0
        %376 = vmatprep.subr.mxu0 0.0
        %377 = vmatpush1.msra.mxu0 0.0
        %378 = vmatprep.subr.mxu0 0.0
        %379 = vmatpush1.msra.mxu0 0.0
        %380 = vmatprep.mubr.f32.mxu0 0.0
        %381 = vmatmul.mubr.f32.gmra.mrb[0].mxu0 %v221
        %v382 = vpop.f32.mrb[0].mxu0
        %v383 = vadd.f32 0.0, %v382
        %v384 = vpop.f32.mrb[0].mxu0
        %385 = vmatprep.mubr.f32.mxu0 0.0
        %386 = vmatmul.mubr.f32.gmra.mrb[0].mxu0 %v224
        %v387 = vpop.f32.mrb[0].mxu0
        %v388 = vadd.f32 0.0, %v387
        %v389 = vpop.f32.mrb[0].mxu0
        %390 = vmatprep.mubr.f32.mxu0 0.0
        %391 = vmatmul.mubr.f32.gmra.mrb[0].mxu0 %v227
        %v392 = vpop.f32.mrb[0].mxu0
        %v393 = vadd.f32 0.0, %v392
        %v394 = vpop.f32.mrb[0].mxu0
        %395 = vmatprep.mubr.f32.mxu0 0.0
        %396 = vmatmul.mubr.f32.gmra.mrb[0].mxu0 %v230
        %v397 = vpop.f32.mrb[0].mxu0
        %v398 = vadd.f32 0.0, %v397
        %v399 = vpop.f32.mrb[0].mxu0
        %400 = vmatprep.mubr.f32.mxu0 0.0
        %401 = vmatmul.mubr.f32.gmra.mrb[0].mxu0 %v233
        %v402 = vpop.f32.mrb[0].mxu0
        %v403 = vadd.f32 0.0, %v402
        %v404 = vpop.f32.mrb[0].mxu0
        %405 = vmatprep.mubr.f32.mxu0 0.0
        %406 = vmatmul.mubr.f32.gmra.mrb[0].mxu0 %v236
        %v407 = vpop.f32.mrb[0].mxu0
        %v408 = vadd.f32 0.0, %v407
        %v409 = vpop.f32.mrb[0].mxu0
        %410 = vmatprep.mubr.f32.mxu0 0.0
        %411 = vmatmul.mubr.f32.gmra.mrb[0].mxu0 %v239
        %v412 = vpop.f32.mrb[0].mxu0
        %v413 = vadd.f32 0.0, %v412
        %v414 = vpop.f32.mrb[0].mxu0
        %415 = vmatprep.mubr.f32.mxu0 0.0
        %416 = vmatmul.mubr.f32.gmra.mrb[0].mxu0 %v242
        %v417 = vpop.f32.mrb[0].mxu0
        %v418 = vadd.f32 0.0, %v417
        %v419 = vpop.f32.mrb[0].mxu0
        %420 = vmatprep.mubr.f32.mxu0 0.0
        %421 = vmatmul.mubr.f32.gmra.mrb[0].mxu0 %v245
        %v422 = vpop.f32.mrb[0].mxu0
        %v423 = vadd.f32 0.0, %v422
        %v424 = vpop.f32.mrb[0].mxu0
        %425 = vmatprep.mubr.f32.mxu0 0.0
        %426 = vmatmul.mubr.f32.gmra.mrb[0].mxu0 %v248
        %v427 = vpop.f32.mrb[0].mxu0
        %v428 = vadd.f32 0.0, %v427
        %v429 = vpop.f32.mrb[0].mxu0
        %430 = vmatprep.mubr.f32.mxu0 0.0
        %431 = vmatmul.mubr.f32.gmra.mrb[0].mxu0 %v251
        %v432 = vpop.f32.mrb[0].mxu0
        %v433 = vadd.f32 0.0, %v432
        %v434 = vpop.f32.mrb[0].mxu0
        %435 = vmatprep.mubr.f32.mxu0 0.0
        %436 = vmatmul.mubr.f32.gmra.mrb[0].mxu0 %v254
        %v437 = vpop.f32.mrb[0].mxu0
        %v438 = vadd.f32 0.0, %v437
        %v439 = vpop.f32.mrb[0].mxu0
        %440 = vmatprep.mubr.f32.mxu0 0.0
        %441 = vmatmul.mubr.f32.gmra.mrb[0].mxu0 %v257
        %v442 = vpop.f32.mrb[0].mxu0
        %v443 = vadd.f32 0.0, %v442
        %v444 = vpop.f32.mrb[0].mxu0
        %445 = vmatprep.mubr.f32.mxu0 0.0
        %446 = vmatmul.mubr.f32.gmra.mrb[0].mxu0 %v260
        %v447 = vpop.f32.mrb[0].mxu0
        %v448 = vadd.f32 0.0, %v447
        %v449 = vpop.f32.mrb[0].mxu0
        %450 = vmatprep.mubr.f32.mxu0 0.0
        %451 = vmatmul.mubr.f32.gmra.mrb[0].mxu0 %v263
        %v452 = vpop.f32.mrb[0].mxu0
        %v453 = vadd.f32 0.0, %v452
        %v454 = vpop.f32.mrb[0].mxu0
        %455 = vmatprep.mubr.f32.mxu0 0.0
        %456 = vmatmul.mubr.f32.gmra.mrb[0].mxu0 %v266
        %v457 = vpop.f32.mrb[0].mxu0
        %v458 = vadd.f32 0.0, %v457
        %v459 = vpop.f32.mrb[0].mxu0
        %460 = vmatprep.mubr.f32.mxu0 0.0
        %461 = vmatmul.mubr.f32.gmra.mrb[0].mxu0 %v269
        %v462 = vpop.f32.mrb[0].mxu0
        %v463 = vadd.f32 0.0, %v462
        %v464 = vpop.f32.mrb[0].mxu0
        %465 = vmatprep.mubr.f32.mxu0 0.0
        %466 = vmatmul.mubr.f32.gmra.mrb[0].mxu0 %v272
        %v467 = vpop.f32.mrb[0].mxu0
        %v468 = vadd.f32 0.0, %v467
        %v469 = vpop.f32.mrb[0].mxu0
        %470 = vmatprep.mubr.f32.mxu0 0.0
        %471 = vmatmul.mubr.f32.gmra.mrb[0].mxu0 %v275
        %v472 = vpop.f32.mrb[0].mxu0
        %v473 = vadd.f32 0.0, %v472
        %v474 = vpop.f32.mrb[0].mxu0
        %475 = vmatprep.mubr.f32.mxu0 0.0
        %476 = vmatmul.mubr.f32.gmra.mrb[0].mxu0 %v278
        %v477 = vpop.f32.mrb[0].mxu0
        %v478 = vadd.f32 0.0, %v477
        %v479 = vpop.f32.mrb[0].mxu0
        %480 = vmatprep.mubr.f32.mxu0 0.0
        %481 = vmatmul.mubr.f32.gmra.mrb[0].mxu0 %v281
        %v482 = vpop.f32.mrb[0].mxu0
        %v483 = vadd.f32 0.0, %v482
        %v484 = vpop.f32.mrb[0].mxu0
        %485 = vmatprep.mubr.f32.mxu0 0.0
        %486 = vmatmul.mubr.f32.gmra.mrb[0].mxu0 %v284
        %v487 = vpop.f32.mrb[0].mxu0
        %v488 = vadd.f32 0.0, %v487
        %v489 = vpop.f32.mrb[0].mxu0
        %490 = vmatprep.mubr.f32.mxu0 0.0
        %491 = vmatmul.mubr.f32.gmra.mrb[0].mxu0 %v287
        %v492 = vpop.f32.mrb[0].mxu0
        %v493 = vadd.f32 0.0, %v492
        %v494 = vpop.f32.mrb[0].mxu0
        %495 = vmatprep.mubr.f32.mxu0 0.0
        %496 = vmatmul.mubr.f32.gmra.mrb[0].mxu0 %v290
        %v497 = vpop.f32.mrb[0].mxu0
        %v498 = vadd.f32 0.0, %v497
        %v499 = vpop.f32.mrb[0].mxu0
        %500 = vmatprep.mubr.f32.mxu0 0.0
        %501 = vmatmul.mubr.f32.gmra.mrb[0].mxu0 %v293
        %v502 = vpop.f32.mrb[0].mxu0
        %v503 = vadd.f32 0.0, %v502
        %v504 = vpop.f32.mrb[0].mxu0
        %505 = vmatprep.mubr.f32.mxu0 0.0
        %506 = vmatmul.mubr.f32.gmra.mrb[0].mxu0 %v296
        %v507 = vpop.f32.mrb[0].mxu0
        %v508 = vadd.f32 0.0, %v507
        %v509 = vpop.f32.mrb[0].mxu0
        %510 = vmatprep.mubr.f32.mxu0 0.0
        %511 = vmatmul.mubr.f32.gmra.mrb[0].mxu0 %v299
        %v512 = vpop.f32.mrb[0].mxu0
        %v513 = vadd.f32 0.0, %v512
        %v514 = vpop.f32.mrb[0].mxu0
        %515 = vmatprep.mubr.f32.mxu0 0.0
        %516 = vmatmul.mubr.f32.gmra.mrb[0].mxu0 %v302
        %v517 = vpop.f32.mrb[0].mxu0
        %v518 = vadd.f32 0.0, %v517
        %v519 = vpop.f32.mrb[0].mxu0
        %520 = vmatprep.mubr.f32.mxu0 0.0
        %521 = vmatmul.mubr.f32.gmra.mrb[0].mxu0 %v305
        %v522 = vpop.f32.mrb[0].mxu0
        %v523 = vadd.f32 0.0, %v522
        %v524 = vpop.f32.mrb[0].mxu0
        %525 = vmatprep.mubr.f32.mxu0 0.0
        %526 = vmatmul.mubr.f32.gmra.mrb[0].mxu0 %v308
        %v527 = vpop.f32.mrb[0].mxu0
        %v528 = vadd.f32 0.0, %v527
        %v529 = vpop.f32.mrb[0].mxu0
        %530 = vmatprep.mubr.f32.mxu0 0.0
        %531 = vmatmul.mubr.f32.gmra.mrb[0].mxu0 %v311
        %v532 = vpop.f32.mrb[0].mxu0
        %v533 = vadd.f32 0.0, %v532
        %v534 = vpop.f32.mrb[0].mxu0
        %535 = vmatprep.mubr.f32.mxu0 0.0
        %536 = vmatmul.mubr.f32.gmra.mrb[0].mxu0 %v314
        %v537 = vpop.f32.mrb[0].mxu0
        %v538 = vadd.f32 0.0, %v537
        %v539 = vpop.f32.mrb[0].mxu0
        %540 = vdwg.mxu0
        %541 = vst [vmem:[%s164] sm:$0xff] %v383
        %542 = vst [vmem:[%s164 + $0x8] sm:$0xff] %v388
        %543 = vst [vmem:[%s164 + $0x10] sm:$0xff] %v393
        %544 = vst [vmem:[%s164 + $0x18] sm:$0xff] %v398
        %545 = vst [vmem:[%s164 + $0x20] sm:$0xff] %v403
        %546 = vst [vmem:[%s164 + $0x28] sm:$0xff] %v408
        %547 = vst [vmem:[%s164 + $0x30] sm:$0xff] %v413
        %548 = vst [vmem:[%s164 + $0x38] sm:$0xff] %v418
        %549 = vst [vmem:[%s164 + $0x40] sm:$0xff] %v423
        %550 = vst [vmem:[%s164 + $0x48] sm:$0xff] %v428
        %551 = vst [vmem:[%s164 + $0x50] sm:$0xff] %v433
        %552 = vst [vmem:[%s164 + $0x58] sm:$0xff] %v438
        %553 = vst [vmem:[%s164 + $0x60] sm:$0xff] %v443
        %554 = vst [vmem:[%s164 + $0x68] sm:$0xff] %v448
        %555 = vst [vmem:[%s164 + $0x70] sm:$0xff] %v453
        %556 = vst [vmem:[%s164 + $0x78] sm:$0xff] %v458
        %557 = vst [vmem:[%s164 + $0x80] sm:$0xff] %v463
        %558 = vst [vmem:[%s164 + $0x88] sm:$0xff] %v468
        %559 = vst [vmem:[%s164 + $0x90] sm:$0xff] %v473
        %560 = vst [vmem:[%s164 + $0x98] sm:$0xff] %v478
        %561 = vst [vmem:[%s164 + $0xa0] sm:$0xff] %v483
        %562 = vst [vmem:[%s164 + $0xa8] sm:$0xff] %v488
        %563 = vst [vmem:[%s164 + $0xb0] sm:$0xff] %v493
        %564 = vst [vmem:[%s164 + $0xb8] sm:$0xff] %v498
        %565 = vst [vmem:[%s164 + $0xc0] sm:$0xff] %v503
        %566 = vst [vmem:[%s164 + $0xc8] sm:$0xff] %v508
        %567 = vst [vmem:[%s164 + $0xd0] sm:$0xff] %v513
        %568 = vst [vmem:[%s164 + $0xd8] sm:$0xff] %v518
        %569 = vst [vmem:[%s164 + $0xe0] sm:$0xff] %v523
        %570 = vst [vmem:[%s164 + $0xe8] sm:$0xff] %v528
        %571 = vst [vmem:[%s164 + $0xf0] sm:$0xff] %v533
        %572 = vst [vmem:[%s164 + $0xf8] sm:$0xff] %v538
        %s573 = sand.u32 %s85, 1
        %s574 = scalar_lea.sflag [#allocation5], %s573
        %s575 = sand.u32 %s85, 1
        %s576 = smul.addr %s575, 256
        %s577 = scalar_lea.vmem [#allocation4], %s576
        // Predicated region
        $region29: #{tpu_custom_call.1} parent=27 // pred_check
          %p578 = pneg %p95
        $region30: #{tpu_custom_call.1} parent=27 // pred_check_branch
          %580 = sbr.rel (%p578) target = $region32
        $region31: #{tpu_custom_call.1} parent=27 // pred_region
          %s581 = smul.u32 32, %s23
          %s583 = ssub.s32 4096, 4096
          %584 = vsyncadd %s574, %s583
          %s585 = smul.addr %s581, 128
          %s586 = scalar_lea.hbm %s3, %s585
          %s587 = sshll.u32 %s577, 4
          %s588 = int_to_ptr.vmem [resolvable:$true] %s587
          %593 = dma.vmem_to_hbm [thread:$0]  %s588, 4096, %s586, %s574, 128, 128, 8
        $region32: #{tpu_custom_call.1} parent=27 // pred_fallthru
          _
      $region28: #{tpu_custom_call.1} parent=5 // pred_fallthru
        _
      %p594 = scmp.le.s32.totalorder 2, %s18
      // Predicated region
      $region33: #{tpu_custom_call.1} parent=5 // pred_check
        %p595 = pneg %p594
      $region34: #{tpu_custom_call.1} parent=5 // pred_check_branch
        %597 = sbr.rel (%p595) target = $region36
      $region35: #{tpu_custom_call.1} parent=5 // pred_region
        %s598 = ssub.s32 %s18, 2
        // Predicated region
        $region37: #{tpu_custom_call.1} parent=35 // pred_check
          %p599 = pneg %p101
        $region38: #{tpu_custom_call.1} parent=35 // pred_check_branch
          %601 = sbr.rel (%p599) target = $region40
        $region39: #{tpu_custom_call.1} parent=35 // pred_region
          %s602 = sand.u32 %s86, 1
          %s603 = scalar_lea.sflag [#allocation5], %s602
          %s604 = sand.u32 %s86, 1
          %s605 = smul.addr %s604, 256
          %s606 = scalar_lea.vmem [#allocation4], %s605
          %607 = dma.done %s603, 4096
        $region40: #{tpu_custom_call.1} parent=35 // pred_fallthru
          _
      $region36: #{tpu_custom_call.1} parent=5 // pred_fallthru
        _
    $region6: #{tpu_custom_call.1} parent=1 // loop_footer
      %s22 = sadd.s32 1, %s18
    $region7: #{tpu_custom_call.1} parent=1 // loop_footer_branch
      %17 = sbr.rel target = $region3
    $region8: #{tpu_custom_call.1} parent=1 // loop_exit
      _
    %608 = vsyncpa [#allocation5], 1
    %s609 = scalar_lea.sflag [#allocation5], 1
    %610 = vsyncpa %s609, 1

</llo_original>
